<compile_context>
chip_gen: v5e
topology: v5e:2x2
jax: 0.10.0
libtpu: 0.0.40
codegen_flags: <defaults>
</compile_context>

<pallas_src>
import jax
import jax.numpy as jnp
from jax.experimental import pallas as pl
from jax.experimental.pallas import tpu as pltpu


USER_IN = 64
MOVIE_IN = 33
HIDDEN = 32
EMB = 32
PACK_IN = 128            # USER_IN + MOVIE_IN padded to a full lane tile
PACK_HID = 2 * HIDDEN    # 64 = [user hidden | movie hidden]
PACK_EMB = 2 * EMB       # 64 = [user emb    | movie emb   ]


def _round_up(x, m):
    return ((x + m - 1) // m) * m


# ----------------------------- Pallas kernel --------------------------------
def _make_kernel(compute_dtype):
    def kernel(uf_ref, mf_ref,            # feature tiles (TB,64), (TB,33)
               w1_ref, b1_ref,            # packed layer-1: (128,64), (1,64)
               w2_ref, b2_ref,            # packed layer-2: (64,64),  (1,64)
               out_ref,                   # (TB, 1) sigmoid(logits)
               x_ref):                    # (TB, 128) VMEM scratch
        tb = uf_ref.shape[0]

        # Pack [user | movie | zero-pad] along lanes.  The pad columns are
        # re-zeroed every step: the scratch persists across grid iterations
        # and stale VMEM could hold NaNs (0 * NaN = NaN in the matmul).
        x_ref[:, 0:USER_IN] = uf_ref[...].astype(compute_dtype)
        x_ref[:, USER_IN:USER_IN + MOVIE_IN] = mf_ref[...].astype(compute_dtype)
        x_ref[:, USER_IN + MOVIE_IN:PACK_IN] = jnp.zeros(
            (tb, PACK_IN - USER_IN - MOVIE_IN), compute_dtype)

        # Fused layer 1: one (TB,128)x(128,64) matmul == both towers' first
        # Linear.  h = [u_h | m_h], then bias + ReLU.
        h = jnp.dot(x_ref[...], w1_ref[...], preferred_element_type=jnp.float32)
        h = jnp.maximum(h + b1_ref[...], 0.0)

        # Fused layer 2: one (TB,64)x(64,64) block-diagonal matmul.
        # e = [user_emb | movie_emb]
        e = jnp.dot(h.astype(compute_dtype), w2_ref[...],
                    preferred_element_type=jnp.float32) + b2_ref[...]

        # Interaction: per-row dot of the two embedding halves, then sigmoid.
        logits = jnp.sum(e[:, :EMB] * e[:, EMB:], axis=1, keepdims=True)
        out_ref[...] = jax.nn.sigmoid(logits)

    return kernel


# ------------------------------- wrapper -------------------------------------
def _pack_params(params, compute_dtype):
    """Build block-diagonal weights / concatenated biases (tiny, one-off)."""
    w1p = jnp.zeros((PACK_IN, PACK_HID), jnp.float32)
    w1p = w1p.at[:USER_IN, :HIDDEN].set(params["uw1"])
    w1p = w1p.at[USER_IN:USER_IN + MOVIE_IN, HIDDEN:].set(params["mw1"])
    b1p = jnp.concatenate([params["ub1"], params["mb1"]], axis=1)   # (1, 64)

    w2p = jnp.zeros((PACK_HID, PACK_EMB), jnp.float32)
    w2p = w2p.at[:HIDDEN, :EMB].set(params["uw2"])
    w2p = w2p.at[HIDDEN:, EMB:].set(params["mw2"])
    b2p = jnp.concatenate([params["ub2"], params["mb2"]], axis=1)   # (1, 64)

    return (w1p.astype(compute_dtype), b1p.astype(jnp.float32),
            w2p.astype(compute_dtype), b2p.astype(jnp.float32))


def two_tower_forward(user_features, movie_features, params, *,
                      block_b=2048, use_bf16=False):
    """user_features: (B, 64) f32, movie_features: (B, 33) f32 -> (B,) f32."""
    B = user_features.shape[0]
    compute_dtype = jnp.bfloat16 if use_bf16 else jnp.float32

    # Tile selection:
    #  * small batches: one tile, rounded to a sublane multiple.
    #  * otherwise: at least 2 tiles (v7x has 2 TensorCores; 'parallel'
    #    grid tiles are sharded across them), capped at block_b rows.
    if B <= 256:
        tb = max(8, _round_up(B, 8))
    else:
        half = -(-B // 2)                       # ceil(B / 2)
        tb = min(block_b, _round_up(half, 8))
    b_pad = _round_up(B, tb)

    uf, mf = user_features, movie_features
    if b_pad != B:
        uf = jnp.pad(uf, ((0, b_pad - B), (0, 0)))
        mf = jnp.pad(mf, ((0, b_pad - B), (0, 0)))

    w1p, b1p, w2p, b2p = _pack_params(params, compute_dtype)

    grid = (b_pad // tb,)
    feat_map = lambda i: (i, 0)      # blocked along batch
    const_map = lambda i: (0, 0)     # weights/biases: VMEM-resident

    in_specs = [
        pl.BlockSpec((tb, USER_IN), feat_map),
        pl.BlockSpec((tb, MOVIE_IN), feat_map),
        pl.BlockSpec((PACK_IN, PACK_HID), const_map),
        pl.BlockSpec((1, PACK_HID), const_map),
        pl.BlockSpec((PACK_HID, PACK_EMB), const_map),
        pl.BlockSpec((1, PACK_EMB), const_map),
    ]
    out_spec = pl.BlockSpec((tb, 1), feat_map)

    out = pl.pallas_call(
        _make_kernel(compute_dtype),
        out_shape=jax.ShapeDtypeStruct((b_pad, 1), jnp.float32),
        grid=grid,
        in_specs=in_specs,
        out_specs=out_spec,
        scratch_shapes=[pltpu.VMEM((tb, PACK_IN), compute_dtype)],
        compiler_params=pltpu.CompilerParams(
            dimension_semantics=("parallel",),        # batch tiles independent
            vmem_limit_bytes=32 * 1024 * 1024,        # explicit; ~3 MiB used
        ),
    )(uf, mf, w1p, b1p, w2p, b2p)
    return out[:B, 0]   # (B,)


# ------------------------- deterministic parameters ---------------------------
def init_params(key, user_in=USER_IN, movie_in=MOVIE_IN, hidden=HIDDEN, emb=EMB):
    ks = jax.random.split(key, 8)

    def lin(k, fan_in, fan_out):
        bound = 1.0 / jnp.sqrt(fan_in)
        return jax.random.uniform(k, (fan_in, fan_out), jnp.float32, -bound, bound)

    return {
        "uw1": lin(ks[0], user_in, hidden),
        "ub1": jax.random.uniform(ks[1], (1, hidden), jnp.float32, -0.1, 0.1),
        "uw2": lin(ks[2], hidden, emb),
        "ub2": jax.random.uniform(ks[3], (1, emb), jnp.float32, -0.1, 0.1),
        "mw1": lin(ks[4], movie_in, hidden),
        "mb1": jax.random.uniform(ks[5], (1, hidden), jnp.float32, -0.1, 0.1),
        "mw2": lin(ks[6], hidden, emb),
        "mb2": jax.random.uniform(ks[7], (1, emb), jnp.float32, -0.1, 0.1),
    }


# pure-JAX reference for a sanity check
def reference_forward(user_features, movie_features, p):
    u = jnp.maximum(user_features @ p["uw1"] + p["ub1"], 0.0) @ p["uw2"] + p["ub2"]
    m = jnp.maximum(movie_features @ p["mw1"] + p["mb1"], 0.0) @ p["mw2"] + p["mb2"]
    return jax.nn.sigmoid(jnp.sum(u * m, axis=1))


if __name__ == "__main__":
    key = jax.random.PRNGKey(0)
    k_u, k_m, k_p = jax.random.split(key, 3)
    params = init_params(k_p)

    # Small shapes consistent with the module: (B, 64) and (B, 33).
    B = 8
    user_features = jax.random.normal(k_u, (B, USER_IN), jnp.float32)
    movie_features = jax.random.normal(k_m, (B, MOVIE_IN), jnp.float32)

    out = two_tower_forward(user_features, movie_features, params)
    out = jax.block_until_ready(out)
    ref = reference_forward(user_features, movie_features, params)
    assert out.shape == (B,)
    assert jnp.allclose(out, ref, atol=1e-5, rtol=1e-5), (out, ref)

    # Multi-tile grid + batch padding path (grid=(3,), TB=128).
    B2 = 300
    k_u2, k_m2 = jax.random.split(jax.random.PRNGKey(1), 2)
    uf2 = jax.random.normal(k_u2, (B2, USER_IN), jnp.float32)
    mf2 = jax.random.normal(k_m2, (B2, MOVIE_IN), jnp.float32)
    out2 = jax.block_until_ready(two_tower_forward(uf2, mf2, params, block_b=128))
    ref2 = reference_forward(uf2, mf2, params)
    assert out2.shape == (B2,)
    assert jnp.allclose(out2, ref2, atol=1e-5, rtol=1e-5)

    # Default-tiling path (>=2 parallel tiles for v7x) + optional bf16 MXU path.
    out3 = jax.block_until_ready(two_tower_forward(uf2, mf2, params))
    assert jnp.allclose(out3, ref2, atol=1e-5, rtol=1e-5)
    out_bf16 = jax.block_until_ready(
        two_tower_forward(uf2, mf2, params, use_bf16=True))
    assert out_bf16.shape == (B2,)
    assert jnp.allclose(out_bf16, ref2, atol=5e-2)   # looser: bf16 operands

    print("KERNEL_OK")
</pallas_src>

<mosaic_0001>
module attributes {stable_mosaic.version = 11 : i64} {
  func.func @kernel(%arg0: i32, %arg1: memref<8x64xf32, #tpu.memory_space<vmem>>, %arg2: memref<8x33xf32, #tpu.memory_space<vmem>>, %arg3: memref<128x64xf32, #tpu.memory_space<vmem>>, %arg4: memref<1x64xf32, #tpu.memory_space<vmem>>, %arg5: memref<64x64xf32, #tpu.memory_space<vmem>>, %arg6: memref<1x64xf32, #tpu.memory_space<vmem>>, %arg7: memref<8x1xf32, #tpu.memory_space<vmem>>, %arg8: memref<8x128xf32, #tpu.memory_space<vmem>>) attributes {dimension_semantics = [#tpu.dimension_semantics<parallel>], iteration_bounds = array<i64: 1>, scalar_prefetch = 0 : i64, scratch_operands = 1 : i64, tpu.core_type = #tpu.core_type<tc>, window_params = [{transform_indices = @transform_0, window_bounds = array<i64: 8, 64>}, {transform_indices = @transform_1, window_bounds = array<i64: 8, 33>}, {pipeline_mode = #tpu.pipeline_mode<synchronous>, transform_indices = @transform_2, window_bounds = array<i64: 128, 64>}, {pipeline_mode = #tpu.pipeline_mode<synchronous>, transform_indices = @transform_3, window_bounds = array<i64: 1, 64>}, {pipeline_mode = #tpu.pipeline_mode<synchronous>, transform_indices = @transform_4, window_bounds = array<i64: 64, 64>}, {pipeline_mode = #tpu.pipeline_mode<synchronous>, transform_indices = @transform_5, window_bounds = array<i64: 1, 64>}, {transform_indices = @transform_6, window_bounds = array<i64: 8, 1>}]} {
    %c0 = arith.constant 0 : index
    %c0_0 = arith.constant 0 : index
    %0 = vector.load %arg1[%c0, %c0_0] : memref<8x64xf32, #tpu.memory_space<vmem>>, vector<8x64xf32>
    %c0_1 = arith.constant 0 : index
    %c0_2 = arith.constant 0 : index
    %1 = vector.load %arg8[%c0_1, %c0_2] : memref<8x128xf32, #tpu.memory_space<vmem>>, vector<8x64xf32>
    tpu.vector_store %arg8[%c0_1, %c0_2], %0 {strides = array<i32>} : memref<8x128xf32, #tpu.memory_space<vmem>>, vector<8x64xf32>,
    %c0_3 = arith.constant 0 : index
    %c0_4 = arith.constant 0 : index
    %2 = vector.load %arg2[%c0_3, %c0_4] : memref<8x33xf32, #tpu.memory_space<vmem>>, vector<8x33xf32>
    %c0_5 = arith.constant 0 : index
    %c64 = arith.constant 64 : index
    %3 = vector.load %arg8[%c0_5, %c64] : memref<8x128xf32, #tpu.memory_space<vmem>>, vector<8x33xf32>
    tpu.vector_store %arg8[%c0_5, %c64], %2 {strides = array<i32>} : memref<8x128xf32, #tpu.memory_space<vmem>>, vector<8x33xf32>,
    %cst = arith.constant 0.000000e+00 : f32
    %4 = vector.broadcast %cst : f32 to vector<8x31xf32>
    %c0_6 = arith.constant 0 : index
    %c97 = arith.constant 97 : index
    %5 = vector.load %arg8[%c0_6, %c97] : memref<8x128xf32, #tpu.memory_space<vmem>>, vector<8x31xf32>
    tpu.vector_store %arg8[%c0_6, %c97], %4 {strides = array<i32>} : memref<8x128xf32, #tpu.memory_space<vmem>>, vector<8x31xf32>,
    %c0_7 = arith.constant 0 : index
    %c0_8 = arith.constant 0 : index
    %6 = vector.load %arg8[%c0_7, %c0_8] : memref<8x128xf32, #tpu.memory_space<vmem>>, vector<8x128xf32>
    %c0_9 = arith.constant 0 : index
    %c0_10 = arith.constant 0 : index
    %7 = vector.load %arg3[%c0_9, %c0_10] : memref<128x64xf32, #tpu.memory_space<vmem>>, vector<128x64xf32>
    %cst_11 = arith.constant dense<0.000000e+00> : vector<8x64xf32>
    %8 = tpu.matmul %6, %7, %cst_11 {dimension_numbers = #tpu.dot_dimension_numbers<[1], [0], [0], [1], [0, 0, 1, 1], [], []>} : vector<8x128xf32>, vector<128x64xf32>, vector<8x64xf32> -> vector<8x64xf32>
    %c0_12 = arith.constant 0 : index
    %c0_13 = arith.constant 0 : index
    %9 = vector.load %arg4[%c0_12, %c0_13] : memref<1x64xf32, #tpu.memory_space<vmem>>, vector<1x64xf32>
    %10 = vector.broadcast %9 : vector<1x64xf32> to vector<8x64xf32>
    %11 = arith.addf %8, %10 : vector<8x64xf32>
    %cst_14 = arith.constant 0.000000e+00 : f32
    %12 = vector.broadcast %cst_14 : f32 to vector<8x64xf32>
    %13 = arith.maximumf %11, %12 : vector<8x64xf32>
    %c0_15 = arith.constant 0 : index
    %c0_16 = arith.constant 0 : index
    %14 = vector.load %arg5[%c0_15, %c0_16] : memref<64x64xf32, #tpu.memory_space<vmem>>, vector<64x64xf32>
    %cst_17 = arith.constant dense<0.000000e+00> : vector<8x64xf32>
    %15 = tpu.matmul %13, %14, %cst_17 {dimension_numbers = #tpu.dot_dimension_numbers<[1], [0], [0], [1], [0, 0, 1, 1], [], []>} : vector<8x64xf32>, vector<64x64xf32>, vector<8x64xf32> -> vector<8x64xf32>
    %c0_18 = arith.constant 0 : index
    %c0_19 = arith.constant 0 : index
    %16 = vector.load %arg6[%c0_18, %c0_19] : memref<1x64xf32, #tpu.memory_space<vmem>>, vector<1x64xf32>
    %17 = vector.broadcast %16 : vector<1x64xf32> to vector<8x64xf32>
    %18 = arith.addf %15, %17 : vector<8x64xf32>
    %19 = vector.extract_strided_slice %18 {offsets = [0, 0], sizes = [8, 32], strides = [1, 1]} : vector<8x64xf32> to vector<8x32xf32>
    %20 = vector.extract_strided_slice %18 {offsets = [0, 32], sizes = [8, 32], strides = [1, 1]} : vector<8x64xf32> to vector<8x32xf32>
    %21 = arith.mulf %19, %20 : vector<8x32xf32>
    %cst_20 = arith.constant dense<0.000000e+00> : vector<8xf32>
    %22 = vector.multi_reduction <add>, %21, %cst_20 [1] : vector<8x32xf32> to vector<8xf32>
    %23 = vector.shape_cast %22 : vector<8xf32> to vector<8x1xf32>
    %24 = arith.negf %23 : vector<8x1xf32>
    %25 = math.exp %24 : vector<8x1xf32>
    %cst_21 = arith.constant 1.000000e+00 : f32
    %26 = vector.broadcast %cst_21 : f32 to vector<8x1xf32>
    %27 = arith.addf %26, %25 : vector<8x1xf32>
    %28 = arith.divf %26, %27 : vector<8x1xf32>
    %c0_22 = arith.constant 0 : index
    %c0_23 = arith.constant 0 : index
    %29 = vector.load %arg7[%c0_22, %c0_23] : memref<8x1xf32, #tpu.memory_space<vmem>>, vector<8x1xf32>
    tpu.vector_store %arg7[%c0_22, %c0_23], %28 {strides = array<i32>} : memref<8x1xf32, #tpu.memory_space<vmem>>, vector<8x1xf32>,
    return
  }
  func.func @transform_0(%arg0: i32) -> (i32, i32) {
    %c0_i32 = arith.constant 0 : i32
    %c0_i32_0 = arith.constant 0 : i32
    return %arg0, %c0_i32 : i32, i32
  }
  func.func @transform_1(%arg0: i32) -> (i32, i32) {
    %c0_i32 = arith.constant 0 : i32
    %c0_i32_0 = arith.constant 0 : i32
    return %arg0, %c0_i32 : i32, i32
  }
  func.func @transform_2(%arg0: i32) -> (i32, i32) {
    %c0_i32 = arith.constant 0 : i32
    %c0_i32_0 = arith.constant 0 : i32
    %c0_i32_1 = arith.constant 0 : i32
    return %c0_i32, %c0_i32_0 : i32, i32
  }
  func.func @transform_3(%arg0: i32) -> (i32, i32) {
    %c0_i32 = arith.constant 0 : i32
    %c0_i32_0 = arith.constant 0 : i32
    %c0_i32_1 = arith.constant 0 : i32
    return %c0_i32, %c0_i32_0 : i32, i32
  }
  func.func @transform_4(%arg0: i32) -> (i32, i32) {
    %c0_i32 = arith.constant 0 : i32
    %c0_i32_0 = arith.constant 0 : i32
    %c0_i32_1 = arith.constant 0 : i32
    return %c0_i32, %c0_i32_0 : i32, i32
  }
  func.func @transform_5(%arg0: i32) -> (i32, i32) {
    %c0_i32 = arith.constant 0 : i32
    %c0_i32_0 = arith.constant 0 : i32
    %c0_i32_1 = arith.constant 0 : i32
    return %c0_i32, %c0_i32_0 : i32, i32
  }
  func.func @transform_6(%arg0: i32) -> (i32, i32) {
    %c0_i32 = arith.constant 0 : i32
    %c0_i32_0 = arith.constant 0 : i32
    return %arg0, %c0_i32 : i32, i32
  }
}

</mosaic_0001>

<llo_original>
// kernel: tpu_custom_call.1
$region0: #{tpu_custom_call.1}
  #allocation0 [shape = 'u32[]', space=smem, size = 0x4, offset = 0x4, fixed_abs, tag = 'smem constant byte address 0x4 - core index']
  #allocation1 [shape = 'u32[72,128]{1,0:T(1,128)}', space=vmem, size = 0x9000, scoped, tag = 'internal scratch']
  #allocation2 [shape = 'f32[8,128]{1,0:T(8,128)}', space=vmem, size = 0x1000, scoped, tag = 'scratch operand']
  %s0 = inlined_call_operand.vmem [shape: f32[8,64], index: 0, kind: input, shape index: {}]
  %s1 = inlined_call_operand.vmem [shape: f32[8,33], index: 1, kind: input, shape index: {}]
  %s2 = inlined_call_operand.vmem [shape: f32[128,64], index: 2, kind: input, shape index: {}]
  %s3 = inlined_call_operand.vmem [shape: f32[1,64], index: 3, kind: input, shape index: {}]
  %s4 = inlined_call_operand.vmem [shape: f32[64,64], index: 4, kind: input, shape index: {}]
  %s5 = inlined_call_operand.vmem [shape: f32[1,64], index: 5, kind: input, shape index: {}]
  %s6 = inlined_call_operand.vmem [shape: f32[8,1], index: 6, kind: output, shape index: {}]
  %s7 = sld [smem:[#allocation0]]
  $region34: #{tpu_custom_call.1} parent=0
    _
  %s9 = ssub.s32 1, %s7
  %s10 = scalar_select 0, %s9, %s7
  // Predicated region
  $region2: #{tpu_custom_call.1} parent=0 // pred_check
    _
  $region3: #{tpu_custom_call.1} parent=0 // pred_check_branch
    %12 = sbr.rel (0) target = $region5
  $region4: #{tpu_custom_call.1} parent=0 // pred_region
    _
  $region5: #{tpu_custom_call.1} parent=0 // pred_fallthru
    _
  // Predicated region
  $region6: #{tpu_custom_call.1} parent=0 // pred_check
    _
  $region7: #{tpu_custom_call.1} parent=0 // pred_check_branch
    %14 = sbr.rel (0) target = $region9
  $region8: #{tpu_custom_call.1} parent=0 // pred_region
    _
  $region9: #{tpu_custom_call.1} parent=0 // pred_fallthru
    _
  // Predicated region
  $region10: #{tpu_custom_call.1} parent=0 // pred_check
    _
  $region11: #{tpu_custom_call.1} parent=0 // pred_check_branch
    %16 = sbr.rel (0) target = $region13
  $region12: #{tpu_custom_call.1} parent=0 // pred_region
    _
  $region13: #{tpu_custom_call.1} parent=0 // pred_fallthru
    _
  // Predicated region
  $region14: #{tpu_custom_call.1} parent=0 // pred_check
    _
  $region15: #{tpu_custom_call.1} parent=0 // pred_check_branch
    %18 = sbr.rel (0) target = $region17
  $region16: #{tpu_custom_call.1} parent=0 // pred_region
    _
  $region17: #{tpu_custom_call.1} parent=0 // pred_fallthru
    _
  // Predicated region
  $region18: #{tpu_custom_call.1} parent=0 // pred_check
    _
  $region19: #{tpu_custom_call.1} parent=0 // pred_check_branch
    %20 = sbr.rel (0) target = $region21
  $region20: #{tpu_custom_call.1} parent=0 // pred_region
    _
  $region21: #{tpu_custom_call.1} parent=0 // pred_fallthru
    _
  // Predicated region
  $region22: #{tpu_custom_call.1} parent=0 // pred_check
    _
  $region23: #{tpu_custom_call.1} parent=0 // pred_check_branch
    %22 = sbr.rel (0) target = $region25
  $region24: #{tpu_custom_call.1} parent=0 // pred_region
    _
  $region25: #{tpu_custom_call.1} parent=0 // pred_fallthru
    _
  %v23 = vld [vmem:[%s0] sm:$0xff]
  %vm24 = vcmask 523264
  %25 = vst.msk [vmem:[#allocation2] sm:$0xff] %vm24, %v23
  %v26 = vld [vmem:[%s1] sm:$0xff]
  %28 = vrot.lane.b32.xlu0 %v26, 64
  %v29 = vpop.permute.xlu0 %28
  %vm31 = vcmask 794112
  %32 = vst.msk [vmem:[#allocation2] sm:$0xff] %vm31, %v29
  %vm33 = vcmask 1048328
  %34 = vst.msk [vmem:[#allocation2] sm:$0xff] %vm33, 0.0
  %v35 = vld [vmem:[#allocation2] sm:$0xff]
  %v36 = vld [vmem:[%s2] sm:$0xff]
  %v37 = vld [vmem:[%s2 + $0x8] sm:$0xff]
  %v38 = vld [vmem:[%s2 + $0x10] sm:$0xff]
  %v39 = vld [vmem:[%s2 + $0x18] sm:$0xff]
  %v40 = vld [vmem:[%s2 + $0x20] sm:$0xff]
  %v41 = vld [vmem:[%s2 + $0x28] sm:$0xff]
  %v42 = vld [vmem:[%s2 + $0x30] sm:$0xff]
  %v43 = vld [vmem:[%s2 + $0x38] sm:$0xff]
  %v44 = vld [vmem:[%s2 + $0x40] sm:$0xff]
  %v45 = vld [vmem:[%s2 + $0x48] sm:$0xff]
  %v46 = vld [vmem:[%s2 + $0x50] sm:$0xff]
  %v47 = vld [vmem:[%s2 + $0x58] sm:$0xff]
  %v48 = vld [vmem:[%s2 + $0x60] sm:$0xff]
  %v49 = vld [vmem:[%s2 + $0x68] sm:$0xff]
  %v50 = vld [vmem:[%s2 + $0x70] sm:$0xff]
  %v51 = vld [vmem:[%s2 + $0x78] sm:$0xff]
  %v52 = vld [vmem:[%s3] sm:$0x1]
  %v54 = vperm.slane %v52, 0
  %56 = vmatpush.msra.mxu0 %v51
  %57 = vmatpush.msra.mxu0 %v50
  %58 = vmatpush.msra.mxu0 %v49
  %59 = vmatpush.msra.mxu0 %v48
  %60 = vmatpush.msra.mxu0 %v47
  %61 = vmatpush.msra.mxu0 %v46
  %62 = vmatpush.msra.mxu0 %v45
  %63 = vmatpush.msra.mxu0 %v44
  %64 = vmatpush.msra.mxu0 %v43
  %65 = vmatpush.msra.mxu0 %v42
  %66 = vmatpush.msra.mxu0 %v41
  %67 = vmatpush.msra.mxu0 %v40
  %68 = vmatpush.msra.mxu0 %v39
  %69 = vmatpush.msra.mxu0 %v38
  %70 = vmatpush.msra.mxu0 %v37
  %71 = vmatpush.msra.mxu0 %v36
  %72 = vmatmul.f32.gmra.mxu0 %v35
  %v73 = vpop.f32.mrf.mxu0
  %v74 = vadd.f32 %v54, %v73
  %75 = vdwg.mxu0
  %v76 = vmax.f32 %v74, 0.0
  %v77 = vld [vmem:[%s4] sm:$0xff]
  %v78 = vld [vmem:[%s4 + $0x8] sm:$0xff]
  %v79 = vld [vmem:[%s4 + $0x10] sm:$0xff]
  %v80 = vld [vmem:[%s4 + $0x18] sm:$0xff]
  %v81 = vld [vmem:[%s4 + $0x20] sm:$0xff]
  %v82 = vld [vmem:[%s4 + $0x28] sm:$0xff]
  %v83 = vld [vmem:[%s4 + $0x30] sm:$0xff]
  %v84 = vld [vmem:[%s4 + $0x38] sm:$0xff]
  %v85 = vld [vmem:[%s5] sm:$0x1]
  %v87 = vperm.slane %v85, 0
  %v90 = vsel %vm24, %v76, 0
  %92 = vmatpush.msra.mxu0 0.0
  %93 = vmatpush.msra.mxu0 0.0
  %94 = vmatpush.msra.mxu0 0.0
  %95 = vmatpush.msra.mxu0 0.0
  %96 = vmatpush.msra.mxu0 0.0
  %97 = vmatpush.msra.mxu0 0.0
  %98 = vmatpush.msra.mxu0 0.0
  %99 = vmatpush.msra.mxu0 0.0
  %100 = vmatpush.msra.mxu0 %v84
  %101 = vmatpush.msra.mxu0 %v83
  %102 = vmatpush.msra.mxu0 %v82
  %103 = vmatpush.msra.mxu0 %v81
  %104 = vmatpush.msra.mxu0 %v80
  %105 = vmatpush.msra.mxu0 %v79
  %106 = vmatpush.msra.mxu0 %v78
  %107 = vmatpush.msra.mxu0 %v77
  %108 = vmatmul.f32.gmra.mxu0 %v90
  %v109 = vpop.f32.mrf.mxu0
  %v110 = vadd.f32 %v87, %v109
  %111 = vdwg.mxu0
  %113 = vrot.lane.b32.xlu0 %v110, 96
  %v114 = vpop.permute.xlu0 %113
  %v116 = vmul.f32 %v110, %v114
  %vm117 = vcmask 261120
  %v118 = vsel %vm117, %v116, 0.0
  %119 = vadd.xlane.f32.xlu0 %v118
  %v120 = vpop.xlane.xlu0 %119
  %v121 = vxor.u32 %v120, 2147483648
  %v122 = vmul.f32 %v121, 1.442695
  %v123 = vpow.pop %v122
  %v124 = vadd.f32 %v123, 1.0
  %v125 = vrcp.pop %v124
  %v126 = vmul.f32 %v124, %v125
  %v127 = vsub.f32 1.0, %v126
  %v128 = vmul.f32 %v125, %v127
  %v129 = vadd.f32 %v125, %v128
  %vm130 = vweird.f32 %v124
  %vm131 = vweird.f32 %v125
  %vm132 = vmor %vm130, %vm131
  %v133 = vsel %vm132, %v125, %v129
  %v134 = vand.u32 2147483647, %v124
  %vm135 = vcmp.eq.f32.partialorder %v134, 8.507059e+37
  %v136 = vand.u32 %v124, 2147483648
  %v137 = vor.u32 1.1754944e-38, %v136
  %v138 = vsel %vm135, %v137, %v133
  %v139 = vmul.f32 1.0, %v138
  %vm140 = vcmask 7168
  %141 = vst.msk [vmem:[%s6] sm:$0xff] %vm140, %v139
  // Predicated region
  $region26: #{tpu_custom_call.1} parent=0 // pred_check
    _
  $region27: #{tpu_custom_call.1} parent=0 // pred_check_branch
    %143 = sbr.rel (0) target = $region29
  $region28: #{tpu_custom_call.1} parent=0 // pred_region
    _
  $region29: #{tpu_custom_call.1} parent=0 // pred_fallthru
    _
  // Predicated region
  $region30: #{tpu_custom_call.1} parent=0 // pred_check
    _
  $region31: #{tpu_custom_call.1} parent=0 // pred_check_branch
    %145 = sbr.rel (0) target = $region33
  $region32: #{tpu_custom_call.1} parent=0 // pred_region
    _
  $region33: #{tpu_custom_call.1} parent=0 // pred_fallthru
    _

</llo_original>
